<compile_context>
chip_gen: v6e
topology: v6e:2x2x1
jax: 0.10.0
libtpu: 0.0.40
codegen_flags: <defaults>
</compile_context>

<pallas_src>
import jax
import jax.numpy as jnp
from jax.experimental import pallas as pl
from jax.experimental.pallas import tpu as pltpu


def _mul_kernel(x_ref, g_ref, o_ref):
    # x_ref: (TC, TL) x.dtype; g_ref: (TC, 1) f32; o_ref: (TC, TL) x.dtype.
    # Multiply in f32 (no-op upcast for f32 inputs), store in output dtype.
    o_ref[...] = (x_ref[...].astype(jnp.float32) * g_ref[...]).astype(o_ref.dtype)


def _pick_tiles(C, L, itemsize):
    """Bandwidth-friendly (TC, TL).

    TL: lane-dense — a multiple of 128 (2048 cap) or the full L (always legal).
    TC: multiple of 8 (or full C), sized so one tile stays <= ~2 MiB so the
    double-buffered in+out tiles fit v5e's 16 MiB scoped-VMEM default and
    v7x's 64 MiB physical VMEM with room to spare.
    """
    TL = L if L <= 2048 else 2048            # 2048 is a multiple of 128
    max_elems = (2 * 1024 * 1024) // itemsize
    tc = max(1, max_elems // TL)
    if tc >= C or C <= 8:
        TC = C                               # full dim is always legal
    else:
        TC = max(8, (tc // 8) * 8)           # sublane (8) constraint
    return TC, TL


def eca_attention_1d(x, conv_weight, conv_bias=None):
    """x: (B, C, L); conv_weight: (1, 1, k); conv_bias: (1,) or None."""
    B, C, L = x.shape
    k = int(conv_weight.shape[-1])
    pad = (k - 1) // 2

    # ---- Gate: mean over L -> k-tap conv over C (zero pad) -> sigmoid.
    # Tiny (B*C outputs); done in plain XLA, accumulated in f32 (safe for bf16 x).
    w = conv_weight.reshape(k).astype(jnp.float32)
    ym = jnp.mean(x.astype(jnp.float32), axis=-1)            # (B, C)
    yp = jnp.pad(ym, ((0, 0), (pad, pad)))
    conv = sum(w[i] * yp[:, i:i + C] for i in range(k))
    if conv_bias is not None:
        conv = conv + conv_bias.reshape(()).astype(jnp.float32)
    gate = jax.nn.sigmoid(conv)[:, :, None]                  # (B, C, 1) f32

    # ---- Broadcast multiply: the HBM-bound part, as a tiled Pallas kernel.
    itemsize = jnp.dtype(x.dtype).itemsize
    TC, TL = _pick_tiles(C, L, itemsize)
    grid = (B, pl.cdiv(C, TC), pl.cdiv(L, TL))

    cost = pl.CostEstimate(
        flops=2 * B * C * L,
        transcendentals=0,
        bytes_accessed=2 * B * C * L * itemsize + B * C * 4,
    )

    return pl.pallas_call(
        _mul_kernel,
        out_shape=jax.ShapeDtypeStruct((B, C, L), x.dtype),
        grid=grid,
        in_specs=[
            pl.BlockSpec((None, TC, TL), lambda b, c, l: (b, c, l)),
            pl.BlockSpec((None, TC, 1), lambda b, c, l: (b, c, 0)),
        ],
        out_specs=pl.BlockSpec((None, TC, TL), lambda b, c, l: (b, c, l)),
        compiler_params=pltpu.CompilerParams(
            dimension_semantics=("parallel", "parallel", "parallel"),
            vmem_limit_bytes=32 * 1024 * 1024,
        ),
        cost_estimate=cost,
    )(x, gate)


def _reference(x, conv_weight, conv_bias):
    C = x.shape[1]
    k = int(conv_weight.shape[-1])
    pad = (k - 1) // 2
    w = conv_weight.reshape(k).astype(jnp.float32)
    ym = jnp.mean(x.astype(jnp.float32), axis=-1)
    yp = jnp.pad(ym, ((0, 0), (pad, pad)))
    conv = sum(w[i] * yp[:, i:i + C] for i in range(k))
    conv = conv + conv_bias.reshape(()).astype(jnp.float32)
    g = jax.nn.sigmoid(conv)
    return x.astype(jnp.float32) * g[:, :, None]


if __name__ == "__main__":
    key = jax.random.PRNGKey(0)
    kx, kw = jax.random.split(key)

    B, C, L = 2, 16, 64
    x = jax.random.normal(kx, (B, C, L), dtype=jnp.float32)

    # Conv1d(1, 1, kernel_size=3): weight (1, 1, 3), kaiming-normal-ish init, bias = 0.
    fan_out = 3.0
    conv_weight = (jax.random.normal(kw, (1, 1, 3), dtype=jnp.float32)
                   * jnp.sqrt(2.0 / fan_out))
    conv_bias = jnp.zeros((1,), dtype=jnp.float32)

    # f32 path
    out = jax.block_until_ready(eca_attention_1d(x, conv_weight, conv_bias))
    ref = _reference(x, conv_weight, conv_bias)
    assert out.shape == (B, C, L)
    assert jnp.allclose(out, ref, atol=1e-5, rtol=1e-5)

    # bf16 path (halves HBM traffic; gate math stays f32, output stored in bf16)
    x_bf = x.astype(jnp.bfloat16)
    out_bf = jax.block_until_ready(eca_attention_1d(x_bf, conv_weight, conv_bias))
    ref_bf = _reference(x_bf, conv_weight, conv_bias)
    assert out_bf.dtype == jnp.bfloat16
    assert jnp.allclose(out_bf.astype(jnp.float32), ref_bf, atol=5e-2, rtol=5e-2)

    print("KERNEL_OK")
</pallas_src>

<mosaic_0001>
module attributes {stable_mosaic.version = 11 : i64} {
  func.func @_mul_kernel(%arg0: i32, %arg1: i32, %arg2: i32, %arg3: memref<1x16x64xf32, #tpu.memory_space<vmem>>, %arg4: memref<1x16x1xf32, #tpu.memory_space<vmem>>, %arg5: memref<1x16x64xf32, #tpu.memory_space<vmem>>) attributes {dimension_semantics = [#tpu.dimension_semantics<parallel>, #tpu.dimension_semantics<parallel>, #tpu.dimension_semantics<parallel>], iteration_bounds = array<i64: 2, 1, 1>, scalar_prefetch = 0 : i64, scratch_operands = 0 : i64, tpu.core_type = #tpu.core_type<tc>, window_params = [{transform_indices = @transform_0, window_bounds = array<i64: 1, 16, 64>}, {transform_indices = @transform_1, window_bounds = array<i64: 1, 16, 1>}, {transform_indices = @transform_2, window_bounds = array<i64: 1, 16, 64>}]} {
    %c0 = arith.constant 0 : index
    %c0_0 = arith.constant 0 : index
    %c0_1 = arith.constant 0 : index
    %0 = vector.load %arg3[%c0, %c0_0, %c0_1] : memref<1x16x64xf32, #tpu.memory_space<vmem>>, vector<1x16x64xf32>
    %1 = vector.shape_cast %0 : vector<1x16x64xf32> to vector<16x64xf32>
    %c0_2 = arith.constant 0 : index
    %c0_3 = arith.constant 0 : index
    %c0_4 = arith.constant 0 : index
    %2 = vector.load %arg4[%c0_2, %c0_3, %c0_4] : memref<1x16x1xf32, #tpu.memory_space<vmem>>, vector<1x16x1xf32>
    %3 = vector.shape_cast %2 : vector<1x16x1xf32> to vector<16x1xf32>
    %4 = vector.broadcast %3 : vector<16x1xf32> to vector<16x64xf32>
    %5 = arith.mulf %1, %4 : vector<16x64xf32>
    %c0_5 = arith.constant 0 : index
    %c0_6 = arith.constant 0 : index
    %c0_7 = arith.constant 0 : index
    %6 = vector.load %arg5[%c0_5, %c0_6, %c0_7] : memref<1x16x64xf32, #tpu.memory_space<vmem>>, vector<1x16x64xf32>
    %7 = vector.shape_cast %6 : vector<1x16x64xf32> to vector<16x64xf32>
    %8 = vector.shape_cast %5 : vector<16x64xf32> to vector<1x16x64xf32>
    tpu.vector_store %arg5[%c0_5, %c0_6, %c0_7], %8 {strides = array<i32>} : memref<1x16x64xf32, #tpu.memory_space<vmem>>, vector<1x16x64xf32>,
    return
  }
  func.func @transform_0(%arg0: i32, %arg1: i32, %arg2: i32) -> (i32, i32, i32) {
    %c0_i32 = arith.constant 0 : i32
    return %arg0, %arg1, %arg2 : i32, i32, i32
  }
  func.func @transform_1(%arg0: i32, %arg1: i32, %arg2: i32) -> (i32, i32, i32) {
    %c0_i32 = arith.constant 0 : i32
    %c0_i32_0 = arith.constant 0 : i32
    return %arg0, %arg1, %c0_i32 : i32, i32, i32
  }
  func.func @transform_2(%arg0: i32, %arg1: i32, %arg2: i32) -> (i32, i32, i32) {
    %c0_i32 = arith.constant 0 : i32
    return %arg0, %arg1, %arg2 : i32, i32, i32
  }
}

</mosaic_0001>

<llo_original>
// kernel: tpu_custom_call.1
$region0: #{tpu_custom_call.1}
  #allocation0 [shape = 'u32[]', space=smem, size = 0x4, offset = 0x4, fixed_abs, tag = 'smem constant byte address 0x4 - core index']
  #allocation1 [shape = 'u32[144,128]{1,0:T(1,128)}', space=vmem, size = 0x12000, scoped, tag = 'internal scratch']
  %s0 = inlined_call_operand.vmem [shape: f32[2,16,64], index: 0, kind: input, shape index: {}]
  %s1 = inlined_call_operand.vmem [shape: f32[2,16,1], index: 1, kind: input, shape index: {}]
  %s2 = inlined_call_operand.hbm [shape: f32[2,16,64], index: 2, kind: output, shape index: {}]
  %s3 = sld [smem:[#allocation0]]
  $region41: #{tpu_custom_call.1} parent=0
    _
  %s5 = ssub.s32 1, %s3
  %s6 = scalar_select 0, %s5, %s3
  $region1: #{tpu_custom_call.1} parent=0
    #allocation2 [shape = 'u8[16384]{0}', space=vmem, size = 0x4000, scoped, tag = 'output window, operand 0']
    #allocation3 [shape = 's32[2]{0}', space=sflag, size = 0x8, scoped, tag = 'scoped memory for tpu_custom_call.1']
    %7 = vsyncpa [#allocation3], 0
    %s8 = scalar_lea.sflag [#allocation3], 1
    %9 = vsyncpa %s8, 0
    loop: start=0, step=1, limit=4
    $region2: #{tpu_custom_call.1} parent=1 // loop_pre_header
      _
    $region3: #{tpu_custom_call.1} parent=1 // loop_header
      %s11 = sphi 0, %s15
      %p12 = scmp.ge.s32.totalorder %s11, 4
      %s18 = sphi 0, %s37
      %s19 = sphi 0, %s33
      %s20 = sphi 0, %s29
      %s21 = sphi 0, %s18
      %s22 = sphi 0, %s19
      %s23 = sphi 0, %s20
      %s24 = sphi 0, %s21
      %s25 = sphi 0, %s22
      %s26 = sphi 0, %s23
      %s44 = sphi 0, %s46
      %s47 = sphi 0, %s44
      %s48 = sphi 0, %s47
      %s64 = sphi 0, %s48
      %s72 = sphi 0, %s74
      %s75 = sphi 0, %s72
      %s76 = sphi 0, %s75
      %s92 = sphi 0, %s76
      %s102 = sphi 0, %s104
      %s105 = sphi 0, %s102
      %s106 = sphi 0, %s105
      %s122 = sphi 0, %s106
    $region4: #{tpu_custom_call.1} parent=1 // loop_header_branch
      %14 = sbr.rel (%p12) target = $region8
    $region5: #{tpu_custom_call.1} parent=1 // loop_body
      %s16 = ssub.s32 %s11, 1
      %s17 = ssub.s32 %s11, 2
      %s27 = sadd.s32 1, %s20
      %p28 = scmp.ge.s32.totalorder %s27, 1
      %s29 = scalar_select %p28, 0, %s27
      %s30 = sadd.s32 1, %s19
      %s31 = scalar_select %p28, %s30, %s19
      %p32 = scmp.ge.s32.totalorder %s31, 1
      %s33 = scalar_select %p32, 0, %s31
      %s34 = sadd.s32 1, %s18
      %s35 = scalar_select %p32, %s34, %s18
      %p36 = scmp.ge.s32.totalorder %s35, 2
      %s37 = scalar_select %p36, 0, %s35
      %s38 = ssub.s32 %s18, %s37
      %s39 = ssub.s32 %s19, %s33
      %s40 = sor.u32 %s38, %s39
      %s41 = ssub.s32 %s20, %s29
      %s42 = sor.u32 %s40, %s41
      %p43 = scmp.eq.s32.totalorder %s42, 0
      %s45 = sadd.s32 %s44, 1
      %s46 = scalar_select %p43, %s44, %s45
      %p49 = pneg %p43
      %p50 = scmp.eq.s32.totalorder %s11, 1
      %p51 = por %p49, %p50
      %p52 = scmp.ne.s32.totalorder %s44, %s47
      %p53 = scmp.eq.s32.totalorder %s11, 0
      %p54 = por %p52, %p53
      %p55 = scmp.ne.s32.totalorder %s44, %s47
      %p56 = scmp.eq.s32.totalorder %s16, 1
      %p57 = por %p55, %p56
      %p58 = scmp.ne.s32.totalorder %s47, %s48
      %p59 = scmp.eq.s32.totalorder %s16, 0
      %p60 = por %p58, %p59
      %p61 = scmp.ne.s32.totalorder %s47, %s48
      %p62 = scmp.eq.s32.totalorder %s17, 1
      %p63 = por %p61, %p62
      %p65 = scmp.ne.s32.totalorder %s48, %s64
      %p66 = scmp.eq.s32.totalorder %s17, 0
      %p67 = por %p65, %p66
      %s68 = ssub.s32 %s18, %s37
      %s69 = ssub.s32 %s19, %s33
      %s70 = sor.u32 %s68, %s69
      %p71 = scmp.eq.s32.totalorder %s70, 0
      %s73 = sadd.s32 %s72, 1
      %s74 = scalar_select %p71, %s72, %s73
      %p77 = pneg %p71
      %p78 = scmp.eq.s32.totalorder %s11, 1
      %p79 = por %p77, %p78
      %p80 = scmp.ne.s32.totalorder %s72, %s75
      %p81 = scmp.eq.s32.totalorder %s11, 0
      %p82 = por %p80, %p81
      %p83 = scmp.ne.s32.totalorder %s72, %s75
      %p84 = scmp.eq.s32.totalorder %s16, 1
      %p85 = por %p83, %p84
      %p86 = scmp.ne.s32.totalorder %s75, %s76
      %p87 = scmp.eq.s32.totalorder %s16, 0
      %p88 = por %p86, %p87
      %p89 = scmp.ne.s32.totalorder %s75, %s76
      %p90 = scmp.eq.s32.totalorder %s17, 1
      %p91 = por %p89, %p90
      %p93 = scmp.ne.s32.totalorder %s76, %s92
      %p94 = scmp.eq.s32.totalorder %s17, 0
      %p95 = por %p93, %p94
      %s96 = ssub.s32 %s18, %s37
      %s97 = ssub.s32 %s19, %s33
      %s98 = sor.u32 %s96, %s97
      %s99 = ssub.s32 %s20, %s29
      %s100 = sor.u32 %s98, %s99
      %p101 = scmp.eq.s32.totalorder %s100, 0
      %s103 = sadd.s32 %s102, 1
      %s104 = scalar_select %p101, %s102, %s103
      %p107 = pneg %p101
      %p108 = scmp.eq.s32.totalorder %s11, 1
      %p109 = por %p107, %p108
      %p110 = scmp.ne.s32.totalorder %s102, %s105
      %p111 = scmp.eq.s32.totalorder %s11, 0
      %p112 = por %p110, %p111
      %p113 = scmp.ne.s32.totalorder %s102, %s105
      %p114 = scmp.eq.s32.totalorder %s16, 1
      %p115 = por %p113, %p114
      %p116 = scmp.ne.s32.totalorder %s105, %s106
      %p117 = scmp.eq.s32.totalorder %s16, 0
      %p118 = por %p116, %p117
      %p119 = scmp.ne.s32.totalorder %s105, %s106
      %p120 = scmp.eq.s32.totalorder %s17, 1
      %p121 = por %p119, %p120
      %p123 = scmp.ne.s32.totalorder %s106, %s122
      %p124 = scmp.eq.s32.totalorder %s17, 0
      %p125 = por %p123, %p124
      %p126 = scmp.le.s32.totalorder 1, %s11
      %p127 = scmp.lt.s32.totalorder %s11, 3
      %p128 = pnand %p126, %p127
      %p129 = pneg %p128
      // Predicated region
      $region9: #{tpu_custom_call.1} parent=5 // pred_check
        _
      $region10: #{tpu_custom_call.1} parent=5 // pred_check_branch
        %131 = sbr.rel (%p128) target = $region12
      $region11: #{tpu_custom_call.1} parent=5 // pred_region
        %s132 = ssub.s32 %s11, 1
      $region12: #{tpu_custom_call.1} parent=5 // pred_fallthru
        _
      %p133 = scmp.lt.s32.totalorder %s11, 2
      // Predicated region
      $region13: #{tpu_custom_call.1} parent=5 // pred_check
        %p134 = pneg %p133
      $region14: #{tpu_custom_call.1} parent=5 // pred_check_branch
        %136 = sbr.rel (%p134) target = $region16
      $region15: #{tpu_custom_call.1} parent=5 // pred_region
        // Predicated region
        $region17: #{tpu_custom_call.1} parent=15 // pred_check
          %p137 = pneg %p54
        $region18: #{tpu_custom_call.1} parent=15 // pred_check_branch
          %139 = sbr.rel (%p137) target = $region20
        $region19: #{tpu_custom_call.1} parent=15 // pred_region
          %s140 = smul.u32 2, %s19
          %p141 = scmp.lt.s32.totalorder %s18, 1
          %s142 = scalar_select %p141, %s18, 1
          %p143 = scmp.lt.s32.totalorder %s140, 1
          %s144 = scalar_select %p143, %s140, 1
          %p145 = scmp.lt.s32.totalorder %s20, 0
          %s146 = scalar_select %p145, %s20, 0
          %s147 = sadd.s32 %s146, %s144
          %s148 = smul.addr %s142, 2
          %s149 = sadd.s32 %s147, %s148
          %s150 = smul.addr %s149, 8
          %s151 = scalar_lea.vmem %s0, %s150
          %s152 = smul.u32 2, %s19
        $region20: #{tpu_custom_call.1} parent=15 // pred_fallthru
          _
        // Predicated region
        $region21: #{tpu_custom_call.1} parent=15 // pred_check
          %p153 = pneg %p82
        $region22: #{tpu_custom_call.1} parent=15 // pred_check_branch
          %155 = sbr.rel (%p153) target = $region24
        $region23: #{tpu_custom_call.1} parent=15 // pred_region
          %s156 = smul.u32 2, %s19
          %p157 = scmp.lt.s32.totalorder %s18, 1
          %s158 = scalar_select %p157, %s18, 1
          %p159 = scmp.lt.s32.totalorder %s156, 1
          %s160 = scalar_select %p159, %s156, 1
          %s161 = smul.addr %s158, 2
          %s162 = sadd.s32 %s160, %s161
          %s163 = smul.addr %s162, 8
          %s164 = scalar_lea.vmem %s1, %s163
          %s165 = smul.u32 2, %s19
        $region24: #{tpu_custom_call.1} parent=15 // pred_fallthru
          _
      $region16: #{tpu_custom_call.1} parent=5 // pred_fallthru
        _
      %p166 = scmp.le.s32.totalorder 1, %s11
      %p167 = scmp.lt.s32.totalorder %s11, 3
      %p168 = pnand %p166, %p167
      %p169 = pneg %p168
      // Predicated region
      $region25: #{tpu_custom_call.1} parent=5 // pred_check
        _
      $region26: #{tpu_custom_call.1} parent=5 // pred_check_branch
        %171 = sbr.rel (%p168) target = $region28
      $region27: #{tpu_custom_call.1} parent=5 // pred_region
        %s172 = ssub.s32 %s11, 1
        %s173 = smul.u32 2, %s22
        %p174 = scmp.lt.s32.totalorder %s21, 1
        %s175 = scalar_select %p174, %s21, 1
        %p176 = scmp.lt.s32.totalorder %s173, 1
        %s177 = scalar_select %p176, %s173, 1
        %p178 = scmp.lt.s32.totalorder %s23, 0
        %s179 = scalar_select %p178, %s23, 0
        %s180 = sadd.s32 %s179, %s177
        %s181 = smul.addr %s175, 2
        %s182 = sadd.s32 %s180, %s181
        %s183 = smul.addr %s182, 8
        %s184 = scalar_lea.vmem %s0, %s183
        %p185 = pneg %p60
        %p186 = pneg %p57
        %s187 = smul.u32 2, %s22
        %p188 = scmp.lt.s32.totalorder %s21, 1
        %s189 = scalar_select %p188, %s21, 1
        %p190 = scmp.lt.s32.totalorder %s187, 1
        %s191 = scalar_select %p190, %s187, 1
        %s192 = smul.addr %s189, 2
        %s193 = sadd.s32 %s191, %s192
        %s194 = smul.addr %s193, 8
        %s195 = scalar_lea.vmem %s1, %s194
        %p196 = pneg %p88
        %p197 = pneg %p85
        %p198 = pneg %p118
        %p199 = pneg %p115
        %s200 = sand.u32 %s105, 1
        %s201 = scalar_lea.sflag [#allocation3], %s200
        %s202 = sand.u32 %s105, 1
        %s203 = smul.addr %s202, 16
        %s204 = scalar_lea.vmem [#allocation2], %s203
        %s205 = smul.u32 2, %s22
        %p206 = scmp.lt.s32.totalorder %s21, 1
        %s207 = scalar_select %p206, %s21, 1
        %p208 = scmp.lt.s32.totalorder %s205, 1
        %s209 = scalar_select %p208, %s205, 1
        %p210 = scmp.lt.s32.totalorder %s23, 0
        %s211 = scalar_select %p210, %s23, 0
        %s212 = sadd.s32 %s211, %s209
        %s213 = smul.addr %s207, 2
        %s214 = sadd.s32 %s212, %s213
        %s215 = smul.addr %s214, 8
        %s216 = scalar_lea.vmem %s0, %s215
        %s217 = smul.u32 2, %s22
        %s218 = smul.u32 2, %s22
        %p219 = scmp.lt.s32.totalorder %s21, 1
        %s220 = scalar_select %p219, %s21, 1
        %p221 = scmp.lt.s32.totalorder %s218, 1
        %s222 = scalar_select %p221, %s218, 1
        %s223 = smul.addr %s220, 2
        %s224 = sadd.s32 %s222, %s223
        %s225 = smul.addr %s224, 8
        %s226 = scalar_lea.vmem %s1, %s225
        %s227 = smul.u32 2, %s22
        %s228 = smul.u32 2, %s22
        %v229 = vld [vmem:[%s216] sm:$0xff]
        %v230 = vld [vmem:[%s216 + $0x8] sm:$0xff]
        %v231 = vld [vmem:[%s226] sm:$0xff]
        %v232 = vld [vmem:[%s226 + $0x8] sm:$0xff]
        %234 = vset.pattern.permute.xlu0 0
        %235 = vperm.xlu0 %234, %v231
        %v236 = vpop.permute.xlu0 %235
        %239 = vset.pattern.permute.xlu0 0
        %240 = vperm.xlu0 %239, %v232
        %v241 = vpop.permute.xlu0 %240
        %v243 = vmul.f32 %v229, %v236
        %v244 = vmul.f32 %v230, %v241
        %vm245 = vcmask 523264
        %246 = vst.msk [vmem:[%s204] sm:$0xff] %vm245, %v243
        %247 = vst.msk [vmem:[%s204 + $0x8] sm:$0xff] %vm245, %v244
        %s248 = sand.u32 %s105, 1
        %s249 = scalar_lea.sflag [#allocation3], %s248
        %s250 = sand.u32 %s105, 1
        %s251 = smul.addr %s250, 16
        %s252 = scalar_lea.vmem [#allocation2], %s251
        // Predicated region
        $region29: #{tpu_custom_call.1} parent=27 // pred_check
          %p253 = pneg %p115
        $region30: #{tpu_custom_call.1} parent=27 // pred_check_branch
          %255 = sbr.rel (%p253) target = $region32
        $region31: #{tpu_custom_call.1} parent=27 // pred_region
          %s256 = smul.u32 2, %s22
          %s258 = ssub.s32 256, 256
          %259 = vsyncadd %s249, %s258
          %s260 = sadd.s32 %s23, %s256
          %s261 = smul.addr %s21, 2
          %s262 = sadd.s32 %s260, %s261
          %s263 = smul.addr %s262, 128
          %s264 = scalar_lea.hbm %s2, %s263
          %s265 = sshll.u32 %s252, 4
          %s266 = int_to_ptr.vmem [resolvable:$true] %s265
          %271 = dma.vmem_to_hbm [thread:$0]  %s266, 256, %s264, %s249, 128, 128, 8
        $region32: #{tpu_custom_call.1} parent=27 // pred_fallthru
          _
      $region28: #{tpu_custom_call.1} parent=5 // pred_fallthru
        _
      %p272 = scmp.le.s32.totalorder 2, %s11
      // Predicated region
      $region33: #{tpu_custom_call.1} parent=5 // pred_check
        %p273 = pneg %p272
      $region34: #{tpu_custom_call.1} parent=5 // pred_check_branch
        %275 = sbr.rel (%p273) target = $region36
      $region35: #{tpu_custom_call.1} parent=5 // pred_region
        %s276 = ssub.s32 %s11, 2
        // Predicated region
        $region37: #{tpu_custom_call.1} parent=35 // pred_check
          %p277 = pneg %p121
        $region38: #{tpu_custom_call.1} parent=35 // pred_check_branch
          %279 = sbr.rel (%p277) target = $region40
        $region39: #{tpu_custom_call.1} parent=35 // pred_region
          %s280 = sand.u32 %s106, 1
          %s281 = scalar_lea.sflag [#allocation3], %s280
          %s282 = sand.u32 %s106, 1
          %s283 = smul.addr %s282, 16
          %s284 = scalar_lea.vmem [#allocation2], %s283
          %285 = dma.done %s281, 256
        $region40: #{tpu_custom_call.1} parent=35 // pred_fallthru
          _
      $region36: #{tpu_custom_call.1} parent=5 // pred_fallthru
        _
    $region6: #{tpu_custom_call.1} parent=1 // loop_footer
      %s15 = sadd.s32 1, %s11
    $region7: #{tpu_custom_call.1} parent=1 // loop_footer_branch
      %10 = sbr.rel target = $region3
    $region8: #{tpu_custom_call.1} parent=1 // loop_exit
      _
    %286 = vsyncpa [#allocation3], 1
    %s287 = scalar_lea.sflag [#allocation3], 1
    %288 = vsyncpa %s287, 1

</llo_original>
